<compile_context>
chip_gen: v5e
topology: v5e:2x2
jax: 0.10.0
libtpu: 0.0.40
codegen_flags: <defaults>
</compile_context>

<pallas_src>
import jax
import jax.numpy as jnp
from jax.experimental import pallas as pl
from jax.experimental.pallas import tpu as pltpu


def char_rnn_seq_kernel(ids_ref, state0_ref, emb_gates_ref, w_rec_ref,
                        wdec_ref, bias_ref, logits_ref, state_ref):
    t = pl.program_id(0)
    B, H4 = state_ref.shape          # H4 = 4H
    H2 = H4 // 2                     # 2H
    G = emb_gates_ref.shape[1]       # 8H

    # First step: load the caller-provided initial state into the carried buffer.
    @pl.when(t == 0)
    def _():
        state_ref[...] = state0_ref[...]

    state = state_ref[...]           # (B, 4H) = [h_fwd|h_bwd|c_fwd|c_bwd]
    h_prev = state[:, :H2]           # (B, 2H)
    c_prev = state[:, H2:]           # (B, 2H)

    # Input projection = B dynamic row loads from the folded emb@W_ih table
    # (replaces the one-hot (B,V)@(V,8H) matmul).
    x_gates = jnp.concatenate(
        [emb_gates_ref[pl.ds(ids_ref[t, b], 1), :] for b in range(B)], axis=0)   # (B, 8H)

    # Recurrent projection for BOTH directions in one MXU pass (block-diagonal w_rec).
    gates = (x_gates
             + jnp.dot(h_prev, w_rec_ref[...], preferred_element_type=jnp.float32)
             + bias_ref[:, :G])                                                   # (B, 8H)

    # Column order (set at prepare time): [i0 i1 | f0 f1 | o0 o1 | g0 g1]
    sig = jax.nn.sigmoid(gates[:, :3 * H2])      # one EUP launch over 192 lanes
    i_g = sig[:, 0:H2]
    f_g = sig[:, H2:2 * H2]
    o_g = sig[:, 2 * H2:3 * H2]
    g_g = jnp.tanh(gates[:, 3 * H2:])            # 64 lanes

    c_new = f_g * c_prev + i_g * g_g             # (B, 2H)
    h_new = o_g * jnp.tanh(c_new)                # (B, 2H) = [h_fwd | h_bwd]

    # Carried state: single lane-dense (B, 128) store.
    state_ref[...] = jnp.concatenate([h_new, c_new], axis=-1)

    # Decoder on lane-dense padded columns; padded bias lanes are -1e30.
    logits_ref[0] = (jnp.dot(h_new, wdec_ref[...], preferred_element_type=jnp.float32)
                     + bias_ref[:, G:])


def prepare_params(params):
    """One-time packing of PyTorch-layout parameters into kernel layout."""
    HI = jax.lax.Precision.HIGHEST
    emb = params["emb"]                                   # (V, H)
    V, H = emb.shape
    H2 = 2 * H
    O = params["w_dec"].shape[0]
    O_pad = ((O + 127) // 128) * 128

    emb_gates = jnp.zeros((V, 8 * H), jnp.float32)        # folded emb @ W_ih^T, both dirs
    w_rec = jnp.zeros((H2, 8 * H), jnp.float32)           # block-diagonal W_hh^T
    b_big = jnp.zeros((8 * H,), jnp.float32)
    # PyTorch gate row order within 4H: i=0, f=1, g=2, o=3.
    # Our column block order: i(0), f(1), o(2), g(3); within a block: dir0 then dir1.
    gate_block = {0: 0, 1: 1, 2: 3, 3: 2}
    for d in range(2):
        w_ih_t = params["w_ih"][d].T                      # (H, 4H)
        w_hh_t = params["w_hh"][d].T                      # (H, 4H)
        b_d = params["b_ih"][d] + params["b_hh"][d]       # (4H,)
        emb_wih = jnp.dot(emb, w_ih_t, precision=HI)      # (V, 4H)  fold embedding
        for gpy in range(4):
            src = slice(gpy * H, (gpy + 1) * H)
            blk = gate_block[gpy]
            dst = slice(blk * H2 + d * H, blk * H2 + (d + 1) * H)
            emb_gates = emb_gates.at[:, dst].set(emb_wih[:, src])
            w_rec = w_rec.at[d * H:(d + 1) * H, dst].set(w_hh_t[:, src])
            b_big = b_big.at[dst].set(b_d[src])

    w_dec_p = jnp.zeros((H2, O_pad), jnp.float32).at[:, :O].set(params["w_dec"].T)
    # padded logits lanes get -1e30 so downstream softmax/argmax on padded output is safe
    b_dec_p = jnp.full((O_pad,), -1e30, jnp.float32).at[:O].set(params["b_dec"])
    bias = jnp.concatenate([b_big, b_dec_p])[None, :]     # (1, 8H + O_pad)

    return {"emb_gates": emb_gates, "w_rec": w_rec, "w_dec_p": w_dec_p,
            "bias": bias, "H": H, "V": V, "O": O, "O_pad": O_pad}


def char_rnn_forward_seq(packed, token_ids_seq, hidden):
    """T sequential CharRNN.forward steps (hidden fed back) fused in ONE pallas_call.

    token_ids_seq: (T, B) int32.  Returns (logits (T, B, O), (h_n, c_n))."""
    h0, c0 = hidden
    T, B = token_ids_seq.shape
    H, V = packed["H"], packed["V"]
    O, O_pad = packed["O"], packed["O_pad"]

    # Pack state once, outside the fused loop: (B, 4H) = [h_fwd|h_bwd|c_fwd|c_bwd]
    state0 = jnp.concatenate([h0[0], h0[1], c0[0], c0[1]], axis=-1)
    ids = token_ids_seq.astype(jnp.int32)

    logits_p, state_n = pl.pallas_call(
        char_rnn_seq_kernel,
        out_shape=(jax.ShapeDtypeStruct((T, B, O_pad), jnp.float32),
                   jax.ShapeDtypeStruct((B, 4 * H), jnp.float32)),
        grid_spec=pltpu.PrefetchScalarGridSpec(
            num_scalar_prefetch=1,
            grid=(T,),
            in_specs=[
                pl.BlockSpec((B, 4 * H), lambda t, ids: (0, 0)),           # state0
                pl.BlockSpec((V, 8 * H), lambda t, ids: (0, 0)),           # emb_gates
                pl.BlockSpec((2 * H, 8 * H), lambda t, ids: (0, 0)),       # w_rec
                pl.BlockSpec((2 * H, O_pad), lambda t, ids: (0, 0)),       # w_dec
                pl.BlockSpec((1, 8 * H + O_pad), lambda t, ids: (0, 0)),   # packed bias
            ],
            out_specs=(
                pl.BlockSpec((1, B, O_pad), lambda t, ids: (t, 0, 0)),     # per-step logits
                pl.BlockSpec((B, 4 * H), lambda t, ids: (0, 0)),           # carried/final state
            ),
        ),
        compiler_params=pltpu.CompilerParams(dimension_semantics=("arbitrary",)),
    )(ids, state0, packed["emb_gates"], packed["w_rec"],
      packed["w_dec_p"], packed["bias"])

    # Convert back to PyTorch (2, B, H) layout once, after the fused loop.
    h_n = jnp.stack([state_n[:, 0 * H:1 * H], state_n[:, 1 * H:2 * H]])
    c_n = jnp.stack([state_n[:, 2 * H:3 * H], state_n[:, 3 * H:4 * H]])
    return logits_p[..., :O], (h_n, c_n)


def char_rnn_forward(packed, token_ids, hidden):
    """Mirrors CharRNN.forward(input, hidden): returns (logits (B,O), (h_n, c_n))."""
    logits_seq, hid = char_rnn_forward_seq(packed, token_ids[None, :], hidden)
    return logits_seq[0], hid


def char_rnn_reference(params, token_ids, hidden):
    """Pure-JAX reference of one CharRNN.forward step (PyTorch semantics)."""
    HI = jax.lax.Precision.HIGHEST
    h0, c0 = hidden
    x = jnp.take(params["emb"], token_ids, axis=0)
    H = x.shape[-1]
    hs, h_n, c_n = [], [], []
    for d in (0, 1):
        gates = (jnp.dot(x, params["w_ih"][d].T, precision=HI) + params["b_ih"][d]
                 + jnp.dot(h0[d], params["w_hh"][d].T, precision=HI) + params["b_hh"][d])
        i = jax.nn.sigmoid(gates[:, 0 * H:1 * H])
        f = jax.nn.sigmoid(gates[:, 1 * H:2 * H])
        g = jnp.tanh(gates[:, 2 * H:3 * H])
        o = jax.nn.sigmoid(gates[:, 3 * H:4 * H])
        c = f * c0[d] + i * g
        h = o * jnp.tanh(c)
        hs.append(h); h_n.append(h); c_n.append(c)
    out = (jnp.dot(jnp.concatenate(hs, axis=-1), params["w_dec"].T, precision=HI)
           + params["b_dec"])
    return out, (jnp.stack(h_n), jnp.stack(c_n))


def init_params(key, input_size, hidden_size, output_size):
    H = hidden_size
    k = 1.0 / jnp.sqrt(jnp.float32(H))
    ks = jax.random.split(key, 7)
    u = lambda kk, shape: jax.random.uniform(kk, shape, jnp.float32, -k, k)
    return {
        "emb":   jax.random.normal(ks[0], (input_size, H), jnp.float32),
        "w_ih":  u(ks[1], (2, 4 * H, H)),     # per-direction input weights (PyTorch layout)
        "w_hh":  u(ks[2], (2, 4 * H, H)),     # per-direction recurrent weights
        "b_ih":  u(ks[3], (2, 4 * H)),
        "b_hh":  u(ks[4], (2, 4 * H)),
        "w_dec": u(ks[5], (output_size, 2 * H)),
        "b_dec": u(ks[6], (output_size,)),
    }


if __name__ == "__main__":
    INPUT_SIZE = 64     # vocab
    HIDDEN = 32
    OUTPUT_SIZE = 64
    BATCH = 2
    N_LAYERS = 1
    SEQ = 8             # fused generation-loop length

    key = jax.random.PRNGKey(0)
    kp, kt = jax.random.split(key)
    params = init_params(kp, INPUT_SIZE, HIDDEN, OUTPUT_SIZE)
    packed = prepare_params(params)          # one-time packing; hoisted off the hot path

    token_ids = jax.random.randint(kt, (SEQ, BATCH), 0, INPUT_SIZE, dtype=jnp.int32)
    # init_hidden(batch_size): zeros of shape (n_layers*2, B, H)
    h0 = jnp.zeros((N_LAYERS * 2, BATCH, HIDDEN), jnp.float32)
    c0 = jnp.zeros((N_LAYERS * 2, BATCH, HIDDEN), jnp.float32)

    # --- single-step: exact CharRNN.forward semantics -------------------------------
    logits1, (h1, c1) = char_rnn_forward(packed, token_ids[0], (h0, c0))
    jax.block_until_ready((logits1, h1, c1))
    ref_l1, (ref_h1, ref_c1) = char_rnn_reference(params, token_ids[0], (h0, c0))
    assert logits1.shape == (BATCH, OUTPUT_SIZE)
    assert h1.shape == (N_LAYERS * 2, BATCH, HIDDEN)
    assert c1.shape == (N_LAYERS * 2, BATCH, HIDDEN)
    assert jnp.allclose(logits1, ref_l1, atol=1e-4, rtol=1e-4)
    assert jnp.allclose(h1, ref_h1, atol=1e-4, rtol=1e-4)
    assert jnp.allclose(c1, ref_c1, atol=1e-4, rtol=1e-4)

    # --- fused multi-step loop (SEQ forward() calls with carried hidden, ONE dispatch)
    logits_seq, (h_n, c_n) = char_rnn_forward_seq(packed, token_ids, (h0, c0))
    jax.block_until_ready((logits_seq, h_n, c_n))

    hid = (h0, c0)
    ref_logits = []
    for t in range(SEQ):
        lt, hid = char_rnn_reference(params, token_ids[t], hid)
        ref_logits.append(lt)
    ref_logits = jnp.stack(ref_logits)
    assert logits_seq.shape == (SEQ, BATCH, OUTPUT_SIZE)
    assert jnp.allclose(logits_seq, ref_logits, atol=1e-4, rtol=1e-4)
    assert jnp.allclose(h_n, hid[0], atol=1e-4, rtol=1e-4)
    assert jnp.allclose(c_n, hid[1], atol=1e-4, rtol=1e-4)

    print("KERNEL_OK")
</pallas_src>

<mosaic_0001>
module attributes {stable_mosaic.version = 11 : i64} {
  func.func @char_rnn_seq_kernel(%arg0: i32, %arg1: memref<1x2xi32, #tpu.memory_space<smem>>, %arg2: memref<2x128xf32, #tpu.memory_space<vmem>>, %arg3: memref<64x256xf32, #tpu.memory_space<vmem>>, %arg4: memref<64x256xf32, #tpu.memory_space<vmem>>, %arg5: memref<64x128xf32, #tpu.memory_space<vmem>>, %arg6: memref<1x384xf32, #tpu.memory_space<vmem>>, %arg7: memref<1x2x128xf32, #tpu.memory_space<vmem>>, %arg8: memref<2x128xf32, #tpu.memory_space<vmem>>) attributes {dimension_semantics = [#tpu.dimension_semantics<arbitrary>], iteration_bounds = array<i64: 1>, scalar_prefetch = 1 : i64, scratch_operands = 0 : i64, tpu.core_type = #tpu.core_type<tc>, window_params = [{pipeline_mode = #tpu.pipeline_mode<synchronous>, transform_indices = @transform_0, window_bounds = array<i64: 2, 128>}, {pipeline_mode = #tpu.pipeline_mode<synchronous>, transform_indices = @transform_1, window_bounds = array<i64: 64, 256>}, {pipeline_mode = #tpu.pipeline_mode<synchronous>, transform_indices = @transform_2, window_bounds = array<i64: 64, 256>}, {pipeline_mode = #tpu.pipeline_mode<synchronous>, transform_indices = @transform_3, window_bounds = array<i64: 64, 128>}, {pipeline_mode = #tpu.pipeline_mode<synchronous>, transform_indices = @transform_4, window_bounds = array<i64: 1, 384>}, {transform_indices = @transform_5, window_bounds = array<i64: 1, 2, 128>}, {pipeline_mode = #tpu.pipeline_mode<synchronous>, transform_indices = @transform_6, window_bounds = array<i64: 2, 128>}]} {
    %c0_i32 = arith.constant 0 : i32
    %0 = arith.cmpi eq, %arg0, %c0_i32 : i32
    %1 = arith.extui %0 : i1 to i32
    %c0_i32_0 = arith.constant 0 : i32
    %2 = arith.cmpi ne, %1, %c0_i32_0 : i32
    scf.if %2 {
      %c0_19 = arith.constant 0 : index
      %c0_20 = arith.constant 0 : index
      %47 = vector.load %arg2[%c0_19, %c0_20] : memref<2x128xf32, #tpu.memory_space<vmem>>, vector<2x128xf32>
      %c0_21 = arith.constant 0 : index
      %c0_22 = arith.constant 0 : index
      %48 = vector.load %arg8[%c0_21, %c0_22] : memref<2x128xf32, #tpu.memory_space<vmem>>, vector<2x128xf32>
      tpu.vector_store %arg8[%c0_21, %c0_22], %47 {strides = array<i32>} : memref<2x128xf32, #tpu.memory_space<vmem>>, vector<2x128xf32>,
    } else {
    }
    %c0 = arith.constant 0 : index
    %c0_1 = arith.constant 0 : index
    %3 = vector.load %arg8[%c0, %c0_1] : memref<2x128xf32, #tpu.memory_space<vmem>>, vector<2x128xf32>
    %4 = vector.extract_strided_slice %3 {offsets = [0, 0], sizes = [2, 64], strides = [1, 1]} : vector<2x128xf32> to vector<2x64xf32>
    %5 = vector.extract_strided_slice %3 {offsets = [0, 64], sizes = [2, 64], strides = [1, 1]} : vector<2x128xf32> to vector<2x64xf32>
    %6 = arith.index_cast %arg0 : i32 to index
    %c0_2 = arith.constant 0 : index
    %7 = memref.load %arg1[%6, %c0_2] : memref<1x2xi32, #tpu.memory_space<smem>>
    %8 = arith.index_cast %7 : i32 to index
    %c0_3 = arith.constant 0 : index
    %9 = vector.load %arg3[%8, %c0_3] : memref<64x256xf32, #tpu.memory_space<vmem>>, vector<1x256xf32>
    %10 = arith.index_cast %arg0 : i32 to index
    %c1 = arith.constant 1 : index
    %11 = memref.load %arg1[%10, %c1] : memref<1x2xi32, #tpu.memory_space<smem>>
    %12 = arith.index_cast %11 : i32 to index
    %c0_4 = arith.constant 0 : index
    %13 = vector.load %arg3[%12, %c0_4] : memref<64x256xf32, #tpu.memory_space<vmem>>, vector<1x256xf32>
    %14 = tpu.concatenate %9, %13 in 0 : vector<1x256xf32>, vector<1x256xf32> -> vector<2x256xf32>
    %c0_5 = arith.constant 0 : index
    %c0_6 = arith.constant 0 : index
    %15 = vector.load %arg4[%c0_5, %c0_6] : memref<64x256xf32, #tpu.memory_space<vmem>>, vector<64x256xf32>
    %cst = arith.constant dense<0.000000e+00> : vector<2x256xf32>
    %16 = tpu.matmul %4, %15, %cst {dimension_numbers = #tpu.dot_dimension_numbers<[1], [0], [0], [1], [0, 0, 1, 1], [], []>} : vector<2x64xf32>, vector<64x256xf32>, vector<2x256xf32> -> vector<2x256xf32>
    %17 = arith.addf %14, %16 : vector<2x256xf32>
    %c0_7 = arith.constant 0 : index
    %c0_8 = arith.constant 0 : index
    %18 = vector.load %arg6[%c0_7, %c0_8] : memref<1x384xf32, #tpu.memory_space<vmem>>, vector<1x256xf32>
    %19 = vector.broadcast %18 : vector<1x256xf32> to vector<2x256xf32>
    %20 = arith.addf %17, %19 : vector<2x256xf32>
    %21 = vector.extract_strided_slice %20 {offsets = [0, 0], sizes = [2, 192], strides = [1, 1]} : vector<2x256xf32> to vector<2x192xf32>
    %22 = arith.negf %21 : vector<2x192xf32>
    %23 = math.exp %22 : vector<2x192xf32>
    %cst_9 = arith.constant 1.000000e+00 : f32
    %24 = vector.broadcast %cst_9 : f32 to vector<2x192xf32>
    %25 = arith.addf %24, %23 : vector<2x192xf32>
    %26 = arith.divf %24, %25 : vector<2x192xf32>
    %27 = vector.extract_strided_slice %26 {offsets = [0, 0], sizes = [2, 64], strides = [1, 1]} : vector<2x192xf32> to vector<2x64xf32>
    %28 = vector.extract_strided_slice %26 {offsets = [0, 64], sizes = [2, 64], strides = [1, 1]} : vector<2x192xf32> to vector<2x64xf32>
    %29 = vector.extract_strided_slice %26 {offsets = [0, 128], sizes = [2, 64], strides = [1, 1]} : vector<2x192xf32> to vector<2x64xf32>
    %30 = vector.extract_strided_slice %20 {offsets = [0, 192], sizes = [2, 64], strides = [1, 1]} : vector<2x256xf32> to vector<2x64xf32>
    %31 = math.tanh %30 : vector<2x64xf32>
    %32 = arith.mulf %28, %5 : vector<2x64xf32>
    %33 = arith.mulf %27, %31 : vector<2x64xf32>
    %34 = arith.addf %32, %33 : vector<2x64xf32>
    %35 = math.tanh %34 : vector<2x64xf32>
    %36 = arith.mulf %29, %35 : vector<2x64xf32>
    %37 = tpu.concatenate %36, %34 in 1 : vector<2x64xf32>, vector<2x64xf32> -> vector<2x128xf32>
    %c0_10 = arith.constant 0 : index
    %c0_11 = arith.constant 0 : index
    %38 = vector.load %arg8[%c0_10, %c0_11] : memref<2x128xf32, #tpu.memory_space<vmem>>, vector<2x128xf32>
    tpu.vector_store %arg8[%c0_10, %c0_11], %37 {strides = array<i32>} : memref<2x128xf32, #tpu.memory_space<vmem>>, vector<2x128xf32>,
    %c0_12 = arith.constant 0 : index
    %c0_13 = arith.constant 0 : index
    %39 = vector.load %arg5[%c0_12, %c0_13] : memref<64x128xf32, #tpu.memory_space<vmem>>, vector<64x128xf32>
    %cst_14 = arith.constant dense<0.000000e+00> : vector<2x128xf32>
    %40 = tpu.matmul %36, %39, %cst_14 {dimension_numbers = #tpu.dot_dimension_numbers<[1], [0], [0], [1], [0, 0, 1, 1], [], []>} : vector<2x64xf32>, vector<64x128xf32>, vector<2x128xf32> -> vector<2x128xf32>
    %c0_15 = arith.constant 0 : index
    %c256 = arith.constant 256 : index
    %41 = vector.load %arg6[%c0_15, %c256] : memref<1x384xf32, #tpu.memory_space<vmem>>, vector<1x128xf32>
    %42 = vector.broadcast %41 : vector<1x128xf32> to vector<2x128xf32>
    %43 = arith.addf %40, %42 : vector<2x128xf32>
    %c0_16 = arith.constant 0 : index
    %c0_17 = arith.constant 0 : index
    %c0_18 = arith.constant 0 : index
    %44 = vector.load %arg7[%c0_16, %c0_17, %c0_18] : memref<1x2x128xf32, #tpu.memory_space<vmem>>, vector<1x2x128xf32>
    %45 = vector.shape_cast %44 : vector<1x2x128xf32> to vector<2x128xf32>
    %46 = vector.shape_cast %43 : vector<2x128xf32> to vector<1x2x128xf32>
    tpu.vector_store %arg7[%c0_16, %c0_17, %c0_18], %46 {strides = array<i32>} : memref<1x2x128xf32, #tpu.memory_space<vmem>>, vector<1x2x128xf32>,
    return
  }
  func.func @transform_0(%arg0: i32, %arg1: memref<1x2xi32, #tpu.memory_space<smem>>) -> (i32, i32) {
    %c0_i32 = arith.constant 0 : i32
    %c0_i32_0 = arith.constant 0 : i32
    %c0_i32_1 = arith.constant 0 : i32
    return %c0_i32, %c0_i32_0 : i32, i32
  }
  func.func @transform_1(%arg0: i32, %arg1: memref<1x2xi32, #tpu.memory_space<smem>>) -> (i32, i32) {
    %c0_i32 = arith.constant 0 : i32
    %c0_i32_0 = arith.constant 0 : i32
    %c0_i32_1 = arith.constant 0 : i32
    return %c0_i32, %c0_i32_0 : i32, i32
  }
  func.func @transform_2(%arg0: i32, %arg1: memref<1x2xi32, #tpu.memory_space<smem>>) -> (i32, i32) {
    %c0_i32 = arith.constant 0 : i32
    %c0_i32_0 = arith.constant 0 : i32
    %c0_i32_1 = arith.constant 0 : i32
    return %c0_i32, %c0_i32_0 : i32, i32
  }
  func.func @transform_3(%arg0: i32, %arg1: memref<1x2xi32, #tpu.memory_space<smem>>) -> (i32, i32) {
    %c0_i32 = arith.constant 0 : i32
    %c0_i32_0 = arith.constant 0 : i32
    %c0_i32_1 = arith.constant 0 : i32
    return %c0_i32, %c0_i32_0 : i32, i32
  }
  func.func @transform_4(%arg0: i32, %arg1: memref<1x2xi32, #tpu.memory_space<smem>>) -> (i32, i32) {
    %c0_i32 = arith.constant 0 : i32
    %c0_i32_0 = arith.constant 0 : i32
    %c0_i32_1 = arith.constant 0 : i32
    return %c0_i32, %c0_i32_0 : i32, i32
  }
  func.func @transform_5(%arg0: i32, %arg1: memref<1x2xi32, #tpu.memory_space<smem>>) -> (i32, i32, i32) {
    %c0_i32 = arith.constant 0 : i32
    %c0_i32_0 = arith.constant 0 : i32
    %c0_i32_1 = arith.constant 0 : i32
    return %arg0, %c0_i32, %c0_i32_0 : i32, i32, i32
  }
  func.func @transform_6(%arg0: i32, %arg1: memref<1x2xi32, #tpu.memory_space<smem>>) -> (i32, i32) {
    %c0_i32 = arith.constant 0 : i32
    %c0_i32_0 = arith.constant 0 : i32
    %c0_i32_1 = arith.constant 0 : i32
    return %c0_i32, %c0_i32_0 : i32, i32
  }
}

</mosaic_0001>

<llo_original>
// kernel: tpu_custom_call.1
$region0: #{tpu_custom_call.1}
  #allocation0 [shape = 'u32[]', space=smem, size = 0x4, offset = 0x4, fixed_abs, tag = 'smem constant byte address 0x4 - core index']
  #allocation1 [shape = 'u32[72,128]{1,0:T(1,128)}', space=vmem, size = 0x9000, scoped, tag = 'internal scratch']
  #allocation2 [shape = 's32[1]{0}', space=sflag, size = 0x4, scoped, tag = 'scoped memory for tpu_custom_call.1']
  #allocation3 [shape = 'u8[512]{0}', space=smem, size = 0x200, scoped, tag = 'prefetched SMEM operand 0']
  %s0 = inlined_call_operand.hbm [shape: s32[1,2], index: 0, kind: input, shape index: {}]
  %s1 = inlined_call_operand.hbm [shape: f32[2,128], index: 1, kind: input, shape index: {}]
  %s2 = inlined_call_operand.hbm [shape: f32[64,256], index: 2, kind: input, shape index: {}]
  %s3 = inlined_call_operand.hbm [shape: f32[64,256], index: 3, kind: input, shape index: {}]
  %s4 = inlined_call_operand.hbm [shape: f32[64,128], index: 4, kind: input, shape index: {}]
  %s5 = inlined_call_operand.vmem [shape: f32[1,384], index: 5, kind: input, shape index: {}]
  %s6 = inlined_call_operand.hbm [shape: f32[1,2,128], index: 6, kind: output, shape index: {0}]
  %s7 = inlined_call_operand.hbm [shape: f32[2,128], index: 7, kind: output, shape index: {1}]
  %8 = xla_tuple %s6, %s7
  %s9 = sld [smem:[#allocation0]]
  $region58: #{tpu_custom_call.1} parent=0
    _
  %s11 = ssub.s32 1, %s9
  %s12 = scalar_select 0, %s11, %s9
  %s14 = sshll.u32 %s0, 4
  %s15 = int_to_ptr.hbm [resolvable:$true] %s14
  %17 = dma.hbm_to_smem %s15, 16, [#allocation3], [#allocation2]
  %19 = dma.done [#allocation2], 16
  %20 = sfence
  $region1: #{tpu_custom_call.1} parent=0
    #allocation4 [shape = 'u8[1024]{0}', space=vmem, size = 0x400, scoped, tag = 'input window, operand 1, single buffered']
    #allocation5 [shape = 's32[1]{0}', space=sflag, size = 0x4, scoped, tag = 'scoped memory for tpu_custom_call.1']
    #allocation6 [shape = 's32[1]{0}', space=sflag, size = 0x4, scoped, tag = 'scoped memory for tpu_custom_call.1']
    #allocation7 [shape = 'u8[65536]{0}', space=vmem, size = 0x10000, scoped, tag = 'input window, operand 2, single buffered']
    #allocation8 [shape = 's32[1]{0}', space=sflag, size = 0x4, scoped, tag = 'scoped memory for tpu_custom_call.1']
    #allocation9 [shape = 'u8[65536]{0}', space=vmem, size = 0x10000, scoped, tag = 'input window, operand 3, single buffered']
    #allocation10 [shape = 'u8[32768]{0}', space=vmem, size = 0x8000, scoped, tag = 'input window, operand 4, single buffered']
    #allocation11 [shape = 's32[1]{0}', space=sflag, size = 0x4, scoped, tag = 'scoped memory for tpu_custom_call.1']
    #allocation12 [shape = 'u8[1024]{0}', space=vmem, size = 0x400, scoped, tag = 'output window, operand 0, single buffered']
    #allocation13 [shape = 'u8[1024]{0}', space=vmem, size = 0x400, scoped, tag = 'output window, operand 1, single buffered']
    #allocation14 [shape = 's32[1]{0}', space=sflag, size = 0x4, scoped, tag = 'scoped memory for tpu_custom_call.1']
    %21 = vsyncpa [#allocation5], 0
    %22 = vsyncpa [#allocation8], 0
    %23 = vsyncpa [#allocation11], 0
    %24 = vsyncpa [#allocation6], 0
    %25 = vsyncpa [#allocation14], 0
    // Predicated region
    $region2: #{tpu_custom_call.1} parent=1 // pred_check
      _
    $region3: #{tpu_custom_call.1} parent=1 // pred_check_branch
      %27 = sbr.rel (0) target = $region5
    $region4: #{tpu_custom_call.1} parent=1 // pred_region
      %29 = vsyncadd [#allocation5], 0
      %s31 = sshll.u32 %s1, 4
      %s32 = int_to_ptr.hbm [resolvable:$true] %s31
      %s33 = sshll.u32 [#allocation4], 4
      %s34 = int_to_ptr.vmem [resolvable:$true] %s33
      %36 = dma.hbm_to_vmem [thread:$0]  %s32, 32, %s34, [#allocation5]
    $region5: #{tpu_custom_call.1} parent=1 // pred_fallthru
      _
    // Predicated region
    $region6: #{tpu_custom_call.1} parent=1 // pred_check
      _
    $region7: #{tpu_custom_call.1} parent=1 // pred_check_branch
      %38 = sbr.rel (0) target = $region9
    $region8: #{tpu_custom_call.1} parent=1 // pred_region
      %40 = vsyncadd [#allocation8], 0
      %s41 = sshll.u32 %s2, 4
      %s42 = int_to_ptr.hbm [resolvable:$true] %s41
      %s43 = sshll.u32 [#allocation7], 4
      %s44 = int_to_ptr.vmem [resolvable:$true] %s43
      %49 = dma.hbm_to_vmem [thread:$0]  %s42, 2048, %s44, [#allocation8], 256, 256, 16
    $region9: #{tpu_custom_call.1} parent=1 // pred_fallthru
      _
    // Predicated region
    $region10: #{tpu_custom_call.1} parent=1 // pred_check
      _
    $region11: #{tpu_custom_call.1} parent=1 // pred_check_branch
      %51 = sbr.rel (0) target = $region13
    $region12: #{tpu_custom_call.1} parent=1 // pred_region
      %53 = vsyncadd [#allocation8], 0
      %s54 = sshll.u32 %s3, 4
      %s55 = int_to_ptr.hbm [resolvable:$true] %s54
      %s56 = sshll.u32 [#allocation9], 4
      %s57 = int_to_ptr.vmem [resolvable:$true] %s56
      %62 = dma.hbm_to_vmem [thread:$0]  %s55, 2048, %s57, [#allocation8], 256, 256, 16
    $region13: #{tpu_custom_call.1} parent=1 // pred_fallthru
      _
    // Predicated region
    $region14: #{tpu_custom_call.1} parent=1 // pred_check
      _
    $region15: #{tpu_custom_call.1} parent=1 // pred_check_branch
      %64 = sbr.rel (0) target = $region17
    $region16: #{tpu_custom_call.1} parent=1 // pred_region
      %66 = vsyncadd [#allocation11], 0
      %s67 = sshll.u32 %s4, 4
      %s68 = int_to_ptr.hbm [resolvable:$true] %s67
      %s69 = sshll.u32 [#allocation10], 4
      %s70 = int_to_ptr.vmem [resolvable:$true] %s69
      %75 = dma.hbm_to_vmem [thread:$0]  %s68, 1024, %s70, [#allocation11], 128, 128, 8
    $region17: #{tpu_custom_call.1} parent=1 // pred_fallthru
      _
    // Predicated region
    $region18: #{tpu_custom_call.1} parent=1 // pred_check
      _
    $region19: #{tpu_custom_call.1} parent=1 // pred_check_branch
      %77 = sbr.rel (0) target = $region21
    $region20: #{tpu_custom_call.1} parent=1 // pred_region
      _
    $region21: #{tpu_custom_call.1} parent=1 // pred_fallthru
      _
    // Predicated region
    $region22: #{tpu_custom_call.1} parent=1 // pred_check
      _
    $region23: #{tpu_custom_call.1} parent=1 // pred_check_branch
      %79 = sbr.rel (0) target = $region25
    $region24: #{tpu_custom_call.1} parent=1 // pred_region
      %81 = dma.done [#allocation5], 32
    $region25: #{tpu_custom_call.1} parent=1 // pred_fallthru
      _
    // Predicated region
    $region26: #{tpu_custom_call.1} parent=1 // pred_check
      _
    $region27: #{tpu_custom_call.1} parent=1 // pred_check_branch
      %83 = sbr.rel (0) target = $region29
    $region28: #{tpu_custom_call.1} parent=1 // pred_region
      %85 = dma.done [#allocation8], 2048
    $region29: #{tpu_custom_call.1} parent=1 // pred_fallthru
      _
    // Predicated region
    $region30: #{tpu_custom_call.1} parent=1 // pred_check
      _
    $region31: #{tpu_custom_call.1} parent=1 // pred_check_branch
      %87 = sbr.rel (0) target = $region33
    $region32: #{tpu_custom_call.1} parent=1 // pred_region
      %89 = dma.done [#allocation8], 2048
    $region33: #{tpu_custom_call.1} parent=1 // pred_fallthru
      _
    // Predicated region
    $region34: #{tpu_custom_call.1} parent=1 // pred_check
      _
    $region35: #{tpu_custom_call.1} parent=1 // pred_check_branch
      %91 = sbr.rel (0) target = $region37
    $region36: #{tpu_custom_call.1} parent=1 // pred_region
      %93 = dma.done [#allocation11], 1024
    $region37: #{tpu_custom_call.1} parent=1 // pred_fallthru
      _
    %p94 = scmp.eq.s32.totalorder 0, 0
    // Predicated region
    $region38: #{tpu_custom_call.1} parent=1 // pred_check
      %p95 = pneg %p94
    $region39: #{tpu_custom_call.1} parent=1 // pred_check_branch
      %97 = sbr.rel (%p95) target = $region41
    $region40: #{tpu_custom_call.1} parent=1 // pred_region
      %v98 = vld [vmem:[#allocation4] sm:$0x3]
      %99 = vst [vmem:[#allocation13] sm:$0x3] %v98
    $region41: #{tpu_custom_call.1} parent=1 // pred_fallthru
      _
    %v100 = vld [vmem:[#allocation13] sm:$0x3]
    %s101 = smul.u32 0, 128
    %s102 = sld [smem:[#allocation3 + %s101]]
    %s103 = sshra.s32 %s102, 3
    %s104 = sand.u32 %s102, 7
    %s105 = sshra.s32 %s102, 3
    %s106 = sand.u32 %s102, 7
    %s107 = smul.u32 %s103, 2
    %s108 = smul.u32 %s107, 8
    %s109 = sadd.s32 %s108, %s106
    %s110 = scalar_lea.vmem [#allocation7], %s109
    %v111 = vld [vmem:[%s110] ss:$8 sm:$0x3]
    %s112 = sadd.s32 %s101, 1
    %s113 = sld [smem:[#allocation3 + %s112]]
    %s114 = sshra.s32 %s113, 3
    %s115 = sand.u32 %s113, 7
    %s116 = sshra.s32 %s113, 3
    %s117 = sand.u32 %s113, 7
    %s118 = smul.u32 %s114, 2
    %s119 = smul.u32 %s118, 8
    %s120 = sadd.s32 %s119, %s117
    %s121 = scalar_lea.vmem [#allocation7], %s120
    %v122 = vld [vmem:[%s121] ss:$8 sm:$0x3]
    %v124 = vperm.slane %v111, 0
    %v125 = vperm.slane %v111, 1
    %v129 = vperm.slane %v122, 0
    %v130 = vperm.slane %v122, 1
    %vm133 = vcmask 1040384
    %v134 = vsel %vm133, %v124, %v129
    %v135 = vsel %vm133, %v125, %v130
    %v136 = vld [vmem:[#allocation9] sm:$0xff]
    %v137 = vld [vmem:[#allocation9 + $0x8] sm:$0xff]
    %v138 = vld [vmem:[#allocation9 + $0x10] sm:$0xff]
    %v139 = vld [vmem:[#allocation9 + $0x18] sm:$0xff]
    %v140 = vld [vmem:[#allocation9 + $0x20] sm:$0xff]
    %v141 = vld [vmem:[#allocation9 + $0x28] sm:$0xff]
    %v142 = vld [vmem:[#allocation9 + $0x30] sm:$0xff]
    %v143 = vld [vmem:[#allocation9 + $0x38] sm:$0xff]
    %v144 = vld [vmem:[#allocation9 + $0x40] sm:$0xff]
    %v145 = vld [vmem:[#allocation9 + $0x48] sm:$0xff]
    %v146 = vld [vmem:[#allocation9 + $0x50] sm:$0xff]
    %v147 = vld [vmem:[#allocation9 + $0x58] sm:$0xff]
    %v148 = vld [vmem:[#allocation9 + $0x60] sm:$0xff]
    %v149 = vld [vmem:[#allocation9 + $0x68] sm:$0xff]
    %v150 = vld [vmem:[#allocation9 + $0x70] sm:$0xff]
    %v151 = vld [vmem:[#allocation9 + $0x78] sm:$0xff]
    %vm152 = vcmask 523264
    %v154 = vsel %vm152, %v100, 0
    %156 = vmatpush.msra.mxu0 0.0
    %157 = vmatpush.msra.mxu0 0.0
    %158 = vmatpush.msra.mxu0 0.0
    %159 = vmatpush.msra.mxu0 0.0
    %160 = vmatpush.msra.mxu0 0.0
    %161 = vmatpush.msra.mxu0 0.0
    %162 = vmatpush.msra.mxu0 0.0
    %163 = vmatpush.msra.mxu0 0.0
    %164 = vmatpush.msra.mxu0 %v150
    %165 = vmatpush.msra.mxu0 %v148
    %166 = vmatpush.msra.mxu0 %v146
    %167 = vmatpush.msra.mxu0 %v144
    %168 = vmatpush.msra.mxu0 %v142
    %169 = vmatpush.msra.mxu0 %v140
    %170 = vmatpush.msra.mxu0 %v138
    %171 = vmatpush.msra.mxu0 %v136
    %172 = vmatmul.f32.gmra.mxu0 %v154
    %v173 = vpop.f32.mrf.mxu0
    %v174 = vadd.f32 0.0, %v173
    %175 = vdwg.mxu0
    %176 = vmatpush.msra.mxu0 0.0
    %177 = vmatpush.msra.mxu0 0.0
    %178 = vmatpush.msra.mxu0 0.0
    %179 = vmatpush.msra.mxu0 0.0
    %180 = vmatpush.msra.mxu0 0.0
    %181 = vmatpush.msra.mxu0 0.0
    %182 = vmatpush.msra.mxu0 0.0
    %183 = vmatpush.msra.mxu0 0.0
    %184 = vmatpush.msra.mxu0 %v151
    %185 = vmatpush.msra.mxu0 %v149
    %186 = vmatpush.msra.mxu0 %v147
    %187 = vmatpush.msra.mxu0 %v145
    %188 = vmatpush.msra.mxu0 %v143
    %189 = vmatpush.msra.mxu0 %v141
    %190 = vmatpush.msra.mxu0 %v139
    %191 = vmatpush.msra.mxu0 %v137
    %192 = vmatmul.f32.gmra.mxu0 %v154
    %v193 = vpop.f32.mrf.mxu0
    %v194 = vadd.f32 0.0, %v193
    %195 = vdwg.mxu0
    %v196 = vadd.f32 %v134, %v174
    %v197 = vadd.f32 %v135, %v194
    %v198 = vld [vmem:[%s5] sm:$0x3]
    %v200 = vperm.slane %v198, 0
    %v201 = vperm.slane %v198, 1
    %v204 = vadd.f32 %v196, %v200
    %v205 = vadd.f32 %v197, %v201
    %v206 = vxor.u32 %v204, 2147483648
    %v207 = vxor.u32 %v205, 2147483648
    %v208 = vmul.f32 %v206, 1.442695
    %v209 = vpow.pop %v208
    %v210 = vmul.f32 %v207, 1.442695
    %v211 = vpow.pop %v210
    %v212 = vadd.f32 %v209, 1.0
    %v213 = vadd.f32 %v211, 1.0
    %v214 = vrcp.pop %v212
    %v215 = vmul.f32 %v212, %v214
    %v216 = vsub.f32 1.0, %v215
    %v217 = vmul.f32 %v214, %v216
    %v218 = vadd.f32 %v214, %v217
    %vm219 = vweird.f32 %v212
    %vm220 = vweird.f32 %v214
    %vm221 = vmor %vm219, %vm220
    %v222 = vsel %vm221, %v214, %v218
    %v223 = vand.u32 2147483647, %v212
    %vm224 = vcmp.eq.f32.partialorder %v223, 8.507059e+37
    %v225 = vand.u32 %v212, 2147483648
    %v226 = vor.u32 1.1754944e-38, %v225
    %v227 = vsel %vm224, %v226, %v222
    %v228 = vmul.f32 1.0, %v227
    %v229 = vrcp.pop %v213
    %v230 = vmul.f32 %v213, %v229
    %v231 = vsub.f32 1.0, %v230
    %v232 = vmul.f32 %v229, %v231
    %v233 = vadd.f32 %v229, %v232
    %vm234 = vweird.f32 %v213
    %vm235 = vweird.f32 %v229
    %vm236 = vmor %vm234, %vm235
    %v237 = vsel %vm236, %v229, %v233
    %v238 = vand.u32 2147483647, %v213
    %vm239 = vcmp.eq.f32.partialorder %v238, 8.507059e+37
    %v240 = vand.u32 %v213, 2147483648
    %v241 = vor.u32 1.1754944e-38, %v240
    %v242 = vsel %vm239, %v241, %v237
    %v243 = vmul.f32 1.0, %v242
    %v244 = vtanh.pop %v205
    %v245 = vmul.f32 %v228, %v100
    %247 = vrot.lane.b32.xlu0 %v244, 64
    %v248 = vpop.permute.xlu0 %247
    %v250 = vmul.f32 %v228, %v248
    %252 = vrot.lane.b32.xlu0 %v250, 64
    %v253 = vpop.permute.xlu0 %252
    %v255 = vadd.f32 %v245, %v253
    %v256 = vtanh.pop %v255
    %258 = vrot.lane.b32.xlu0 %v256, 64
    %v259 = vpop.permute.xlu0 %258
    %v261 = vmul.f32 %v243, %v259
    %v262 = vsel %vm152, %v261, %v255
    %263 = vst [vmem:[#allocation13] sm:$0x3] %v262
    %v264 = vld [vmem:[#allocation10] sm:$0xff]
    %v265 = vld [vmem:[#allocation10 + $0x8] sm:$0xff]
    %v266 = vld [vmem:[#allocation10 + $0x10] sm:$0xff]
    %v267 = vld [vmem:[#allocation10 + $0x18] sm:$0xff]
    %v268 = vld [vmem:[#allocation10 + $0x20] sm:$0xff]
    %v269 = vld [vmem:[#allocation10 + $0x28] sm:$0xff]
    %v270 = vld [vmem:[#allocation10 + $0x30] sm:$0xff]
    %v271 = vld [vmem:[#allocation10 + $0x38] sm:$0xff]
    %v272 = vld [vmem:[%s5 + $0x2] sm:$0x1]
    %v274 = vperm.slane %v272, 0
    %v277 = vsel %vm152, %v261, 0
    %279 = vmatpush.msra.mxu0 0.0
    %280 = vmatpush.msra.mxu0 0.0
    %281 = vmatpush.msra.mxu0 0.0
    %282 = vmatpush.msra.mxu0 0.0
    %283 = vmatpush.msra.mxu0 0.0
    %284 = vmatpush.msra.mxu0 0.0
    %285 = vmatpush.msra.mxu0 0.0
    %286 = vmatpush.msra.mxu0 0.0
    %287 = vmatpush.msra.mxu0 %v271
    %288 = vmatpush.msra.mxu0 %v270
    %289 = vmatpush.msra.mxu0 %v269
    %290 = vmatpush.msra.mxu0 %v268
    %291 = vmatpush.msra.mxu0 %v267
    %292 = vmatpush.msra.mxu0 %v266
    %293 = vmatpush.msra.mxu0 %v265
    %294 = vmatpush.msra.mxu0 %v264
    %295 = vmatmul.f32.gmra.mxu0 %v277
    %v296 = vpop.f32.mrf.mxu0
    %v297 = vadd.f32 %v274, %v296
    %298 = vdwg.mxu0
    %299 = vst [vmem:[#allocation12] sm:$0x3] %v297
    // Predicated region
    $region42: #{tpu_custom_call.1} parent=1 // pred_check
      _
    $region43: #{tpu_custom_call.1} parent=1 // pred_check_branch
      %301 = sbr.rel (0) target = $region45
    $region44: #{tpu_custom_call.1} parent=1 // pred_region
      %303 = vsyncadd [#allocation6], 0
      %s305 = sshll.u32 [#allocation12], 4
      %s306 = int_to_ptr.vmem [resolvable:$true] %s305
      %s307 = sshll.u32 %s6, 4
      %s308 = int_to_ptr.hbm [resolvable:$true] %s307
      %310 = dma.vmem_to_hbm [thread:$0]  %s306, 32, %s308, [#allocation6]
    $region45: #{tpu_custom_call.1} parent=1 // pred_fallthru
      _
    // Predicated region
    $region46: #{tpu_custom_call.1} parent=1 // pred_check
      _
    $region47: #{tpu_custom_call.1} parent=1 // pred_check_branch
      %312 = sbr.rel (0) target = $region49
    $region48: #{tpu_custom_call.1} parent=1 // pred_region
      %314 = vsyncadd [#allocation14], 0
      %s316 = sshll.u32 [#allocation13], 4
      %s317 = int_to_ptr.vmem [resolvable:$true] %s316
      %s318 = sshll.u32 %s7, 4
      %s319 = int_to_ptr.hbm [resolvable:$true] %s318
      %321 = dma.vmem_to_hbm [thread:$0]  %s317, 32, %s319, [#allocation14]
    $region49: #{tpu_custom_call.1} parent=1 // pred_fallthru
      _
    // Predicated region
    $region50: #{tpu_custom_call.1} parent=1 // pred_check
      _
    $region51: #{tpu_custom_call.1} parent=1 // pred_check_branch
      %323 = sbr.rel (0) target = $region53
    $region52: #{tpu_custom_call.1} parent=1 // pred_region
      %325 = dma.done [#allocation6], 32
    $region53: #{tpu_custom_call.1} parent=1 // pred_fallthru
      _
    // Predicated region
    $region54: #{tpu_custom_call.1} parent=1 // pred_check
      _
    $region55: #{tpu_custom_call.1} parent=1 // pred_check_branch
      %327 = sbr.rel (0) target = $region57
    $region56: #{tpu_custom_call.1} parent=1 // pred_region
      %329 = dma.done [#allocation14], 32
    $region57: #{tpu_custom_call.1} parent=1 // pred_fallthru
      _
    %330 = vsyncpa [#allocation5], 1
    %331 = vsyncpa [#allocation8], 1
    %332 = vsyncpa [#allocation11], 1
    %333 = vsyncpa [#allocation6], 1
    %334 = vsyncpa [#allocation14], 1

</llo_original>
